<compile_context>
chip_gen: v7x
topology: tpu7x:2x2x1
jax: 0.10.0
libtpu: 0.0.40
codegen_flags: <defaults>
</compile_context>

<pallas_src>
from functools import partial

import jax
import jax.numpy as jnp
from jax.experimental import pallas as pl
from jax.experimental.pallas import tpu as pltpu


def _round_up(n: int, m: int) -> int:
    return ((n + m - 1) // m) * m


def _vmem_budget_bytes() -> int:
    """~80% of the per-core VMEM capacity (generation aware), conservative fallback."""
    cap = 64 * 1024 * 1024  # conservative default (v7x per-core VMEM)
    try:
        cap = int(getattr(pltpu.get_tpu_info(), "vmem_capacity_bytes", cap))
    except Exception:
        pass
    return min(int(cap * 0.8), 100 * 1024 * 1024)


def gaussian_kernel(x_ref, bias_ref, w_ref, o_ref):
    """One (batch-tile i, W row-block k) step of z = y^T (0.5*W_sym) y.

    Transposed, lane-dense layout:
      x_ref   : (Cp, TB)  channels on sublanes, batch on lanes
      bias_ref: (Cp, 1)   broadcast along lanes
      w_ref   : (TK, Cp)  row-block k of the folded weight 0.5 * W_sym
      o_ref   : (1, TB)   per-batch result, accumulated over the k grid axis
    """
    k = pl.program_id(1)
    tk = w_ref.shape[0]

    y = x_ref[...] + bias_ref[...]                                    # (Cp, TB)  VPU
    wy = jnp.dot(w_ref[...], y, preferred_element_type=jnp.float32)   # (TK, TB)  MXU

    if tk == x_ref.shape[0]:
        y_k = y                                   # single k block: rows cover all of y
    else:
        row0 = pl.multiple_of(k * tk, tk)
        y_k = x_ref[pl.ds(row0, tk), :] + bias_ref[pl.ds(row0, tk), :]  # (TK, TB)

    # Reduce along the sublane axis: mostly VPU vreg adds + tiny sublane fold.
    # Result is already lane-major so the (1, TB) store is an unmasked vst.
    z = jnp.sum(wy * y_k, axis=0, keepdims=True)                      # (1, TB)

    @pl.when(k == 0)
    def _():
        o_ref[...] = jnp.zeros_like(o_ref)

    o_ref[...] += z


@partial(jax.jit, static_argnames=("force_k_tile",))
def gaussian_forward(x, bias, w_raw, *, force_k_tile=None):
    """x: (B, C) f32, bias: (C,) f32, w_raw: (1, C, C) f32 (pre-parametrization)."""
    B, C = x.shape
    x = x.astype(jnp.float32)
    bias = bias.astype(jnp.float32)
    w2d = w_raw[0].astype(jnp.float32)

    # --- parameter setup (plain JAX, not the hot path) ----------------------
    # Symmetric parametrization + exact fold of the 0.5 output scale (power of 2).
    w_half = 0.5 * (jnp.triu(w2d) + jnp.triu(w2d, 1).T)

    budget = _vmem_budget_bytes()
    reserve = 16 * 1024 * 1024           # headroom for x tiles, bias, out, scratch
    f32 = 4

    # --- channel (K) tiling of W --------------------------------------------
    Cp0 = _round_up(C, 128)
    if force_k_tile is not None:
        TK = _round_up(min(int(force_k_tile), Cp0), 128)
    elif 2 * Cp0 * Cp0 * f32 + reserve <= budget:
        TK = Cp0                         # W fully VMEM-resident (fast path)
    else:
        # Stream W as double-buffered (TK, Cp) row blocks (~<= 8 MiB per buffer).
        per_buf = max(min((budget - reserve) // 4, 8 * 1024 * 1024), 128 * Cp0 * f32)
        TK = max(128, min(Cp0, (per_buf // (Cp0 * f32)) // 128 * 128))
    n_k = pl.cdiv(Cp0, TK)
    Cp = n_k * TK                        # extra zero channel padding keeps TK | Cp

    # --- batch tiling: byte-targeted TB (multiple of 128) -------------------
    x_rem = budget - 2 * TK * Cp * f32 - 2 * Cp * f32
    tb_fit = max(128, (max(x_rem, 0) // (2 * Cp * f32)) // 128 * 128)
    tb_target = max(128, min(tb_fit, ((4 * 1024 * 1024) // (Cp * f32)) // 128 * 128))
    n_tiles = max(1, pl.cdiv(B, tb_target))
    if B >= 256:
        n_tiles = max(n_tiles, 2)        # keep both v7x TensorCores busy
    TB = max(128, min(tb_fit, _round_up(pl.cdiv(B, n_tiles), 128)))
    n_tiles = pl.cdiv(B, TB)
    Bp = n_tiles * TB

    # --- single wrapper copy: channel-pad + batch-pad + transpose -----------
    # (zero padding keeps the quadratic form numerically exact; padded batch
    #  lanes are sliced away below)
    xT = jnp.zeros((Cp, Bp), jnp.float32).at[:C, :B].set(x.T)
    bias_p = jnp.zeros((Cp, 1), jnp.float32).at[:C, 0].set(bias)
    w_p = jnp.zeros((Cp, Cp), jnp.float32).at[:C, :C].set(w_half)

    out_slab = pl.pallas_call(
        gaussian_kernel,
        out_shape=jax.ShapeDtypeStruct((1, Bp), jnp.float32),
        grid=(n_tiles, n_k),
        in_specs=[
            pl.BlockSpec((Cp, TB), lambda i, k: (0, i)),   # x^T tile (constant over k)
            pl.BlockSpec((Cp, 1), lambda i, k: (0, 0)),    # bias: VMEM-resident
            pl.BlockSpec((TK, Cp), lambda i, k: (k, 0)),   # W row-block (resident if n_k==1)
        ],
        out_specs=pl.BlockSpec((1, TB), lambda i, k: (0, i)),  # lane-dense result slab
        compiler_params=pltpu.CompilerParams(
            dimension_semantics=("parallel", "arbitrary"),
            vmem_limit_bytes=int(budget),
        ),
    )(xT, bias_p, w_p)

    return out_slab[0, :B].reshape(B, 1)


def gaussian_reference(x, bias, w_raw):
    """Pure-JAX reference matching the PyTorch forward exactly."""
    w2d = w_raw[0]
    w_sym = jnp.triu(w2d) + jnp.triu(w2d, 1).T
    y = x + bias
    z = jnp.einsum('bi,ij,bj->b', y, w_sym, y)[:, None]
    return 0.5 * z


if __name__ == "__main__":
    key = jax.random.PRNGKey(0)
    k_x, k_b, k_w = jax.random.split(key, 3)

    # --- test 1: module-like small shapes (resident-W fast path) ------------
    B, C = 8, 4
    x = jax.random.normal(k_x, (B, C), dtype=jnp.float32)
    # bias ~ Uniform(-1, 1), deterministic (matches noise.uniform_(-1., 1.))
    bias = jax.random.uniform(k_b, (C,), dtype=jnp.float32, minval=-1.0, maxval=1.0)
    # nn.Bilinear weight (out=1, in1=C, in2=C), default init U(-1/sqrt(C), 1/sqrt(C))
    bound = 1.0 / float(C) ** 0.5
    w_raw = jax.random.uniform(k_w, (1, C, C), dtype=jnp.float32,
                               minval=-bound, maxval=bound)

    out = jax.block_until_ready(gaussian_forward(x, bias, w_raw))
    ref = gaussian_reference(x, bias, w_raw)
    assert out.shape == (B, 1)
    assert jnp.allclose(out, ref, atol=1e-5, rtol=1e-5), (out, ref)

    # --- test 2: exercise the K-tiled (large-C fallback) path ---------------
    B2, C2 = 40, 200
    x2 = jax.random.normal(k_x, (B2, C2), dtype=jnp.float32)
    bias2 = jax.random.uniform(k_b, (C2,), dtype=jnp.float32, minval=-1.0, maxval=1.0)
    bound2 = 1.0 / float(C2) ** 0.5
    w_raw2 = jax.random.uniform(k_w, (1, C2, C2), dtype=jnp.float32,
                                minval=-bound2, maxval=bound2)

    out2 = jax.block_until_ready(gaussian_forward(x2, bias2, w_raw2, force_k_tile=128))
    ref2 = gaussian_reference(x2, bias2, w_raw2)
    assert out2.shape == (B2, 1)
    assert jnp.allclose(out2, ref2, atol=1e-3, rtol=1e-3), (out2, ref2)

    print("KERNEL_OK")
</pallas_src>

<mosaic_0001>
module attributes {stable_mosaic.version = 11 : i64} {
  func.func @gaussian_kernel(%arg0: i32, %arg1: i32, %arg2: memref<128x128xf32, #tpu.memory_space<vmem>>, %arg3: memref<128x1xf32, #tpu.memory_space<vmem>>, %arg4: memref<128x128xf32, #tpu.memory_space<vmem>>, %arg5: memref<1x128xf32, #tpu.memory_space<vmem>>) attributes {dimension_semantics = [#tpu.dimension_semantics<parallel>, #tpu.dimension_semantics<arbitrary>], iteration_bounds = array<i64: 1, 1>, scalar_prefetch = 0 : i64, scratch_operands = 0 : i64, tpu.core_type = #tpu.core_type<tc>, window_params = [{transform_indices = @transform_0, window_bounds = array<i64: 128, 128>}, {pipeline_mode = #tpu.pipeline_mode<synchronous>, transform_indices = @transform_1, window_bounds = array<i64: 128, 1>}, {transform_indices = @transform_2, window_bounds = array<i64: 128, 128>}, {transform_indices = @transform_3, window_bounds = array<i64: 1, 128>}]} {
    %c0 = arith.constant 0 : index
    %c0_0 = arith.constant 0 : index
    %0 = vector.load %arg2[%c0, %c0_0] : memref<128x128xf32, #tpu.memory_space<vmem>>, vector<128x128xf32>
    %c0_1 = arith.constant 0 : index
    %c0_2 = arith.constant 0 : index
    %1 = vector.load %arg3[%c0_1, %c0_2] : memref<128x1xf32, #tpu.memory_space<vmem>>, vector<128x1xf32>
    %2 = vector.broadcast %1 : vector<128x1xf32> to vector<128x128xf32>
    %3 = arith.addf %0, %2 : vector<128x128xf32>
    %c0_3 = arith.constant 0 : index
    %c0_4 = arith.constant 0 : index
    %4 = vector.load %arg4[%c0_3, %c0_4] : memref<128x128xf32, #tpu.memory_space<vmem>>, vector<128x128xf32>
    %cst = arith.constant dense<0.000000e+00> : vector<128x128xf32>
    %5 = tpu.matmul %4, %3, %cst {dimension_numbers = #tpu.dot_dimension_numbers<[1], [0], [0], [1], [0, 0, 1, 1], [], []>} : vector<128x128xf32>, vector<128x128xf32>, vector<128x128xf32> -> vector<128x128xf32>
    %6 = arith.mulf %5, %3 : vector<128x128xf32>
    %cst_5 = arith.constant dense<0.000000e+00> : vector<128xf32>
    %7 = vector.multi_reduction <add>, %6, %cst_5 [0] : vector<128x128xf32> to vector<128xf32>
    %8 = vector.shape_cast %7 : vector<128xf32> to vector<1x128xf32>
    %c0_i32 = arith.constant 0 : i32
    %9 = arith.cmpi eq, %arg1, %c0_i32 : i32
    %10 = arith.extui %9 : i1 to i32
    %c0_i32_6 = arith.constant 0 : i32
    %11 = arith.cmpi ne, %10, %c0_i32_6 : i32
    scf.if %11 {
      %cst_11 = arith.constant 0.000000e+00 : f32
      %15 = vector.broadcast %cst_11 : f32 to vector<1x128xf32>
      %c0_12 = arith.constant 0 : index
      %c0_13 = arith.constant 0 : index
      %16 = vector.load %arg5[%c0_12, %c0_13] : memref<1x128xf32, #tpu.memory_space<vmem>>, vector<1x128xf32>
      tpu.vector_store %arg5[%c0_12, %c0_13], %15 {strides = array<i32>} : memref<1x128xf32, #tpu.memory_space<vmem>>, vector<1x128xf32>,
    } else {
    }
    %c0_7 = arith.constant 0 : index
    %c0_8 = arith.constant 0 : index
    %12 = vector.load %arg5[%c0_7, %c0_8] : memref<1x128xf32, #tpu.memory_space<vmem>>, vector<1x128xf32>
    %13 = arith.addf %12, %8 : vector<1x128xf32>
    %c0_9 = arith.constant 0 : index
    %c0_10 = arith.constant 0 : index
    %14 = vector.load %arg5[%c0_9, %c0_10] : memref<1x128xf32, #tpu.memory_space<vmem>>, vector<1x128xf32>
    tpu.vector_store %arg5[%c0_9, %c0_10], %13 {strides = array<i32>} : memref<1x128xf32, #tpu.memory_space<vmem>>, vector<1x128xf32>,
    return
  }
  func.func @transform_0(%arg0: i32, %arg1: i32) -> (i32, i32) {
    %c0_i32 = arith.constant 0 : i32
    %c0_i32_0 = arith.constant 0 : i32
    return %c0_i32, %arg0 : i32, i32
  }
  func.func @transform_1(%arg0: i32, %arg1: i32) -> (i32, i32) {
    %c0_i32 = arith.constant 0 : i32
    %c0_i32_0 = arith.constant 0 : i32
    %c0_i32_1 = arith.constant 0 : i32
    return %c0_i32, %c0_i32_0 : i32, i32
  }
  func.func @transform_2(%arg0: i32, %arg1: i32) -> (i32, i32) {
    %c0_i32 = arith.constant 0 : i32
    %c0_i32_0 = arith.constant 0 : i32
    return %arg1, %c0_i32 : i32, i32
  }
  func.func @transform_3(%arg0: i32, %arg1: i32) -> (i32, i32) {
    %c0_i32 = arith.constant 0 : i32
    %c0_i32_0 = arith.constant 0 : i32
    return %c0_i32, %arg0 : i32, i32
  }
}

</mosaic_0001>

<llo_original>
// kernel: gaussian_forward.1
$region0: #{gaussian_forward.1}
  #allocation0 [shape = 'u32[]', space=smem, size = 0x4, offset = 0x4, fixed_abs, tag = 'smem constant byte address 0x4 - core index']
  #allocation1 [shape = 'u32[144,128]{1,0:T(1,128)}', space=vmem, size = 0x12000, scoped, tag = 'internal scratch']
  %s0 = inlined_call_operand.vmem [shape: f32[128,128], index: 0, kind: input, shape index: {}]
  %s1 = inlined_call_operand.vmem [shape: f32[128,1], index: 1, kind: input, shape index: {}]
  %s2 = inlined_call_operand.vmem [shape: f32[128,128], index: 2, kind: input, shape index: {}]
  %s3 = inlined_call_operand.vmem [shape: f32[1,128], index: 3, kind: output, shape index: {}]
  %s4 = sld [smem:[#allocation0]]
  $region26: #{gaussian_forward.1} parent=0
    _
  %s6 = ssub.s32 1, %s4
  %s7 = scalar_select 0, %s6, %s4
  // Predicated region
  $region2: #{gaussian_forward.1} parent=0 // pred_check
    _
  $region3: #{gaussian_forward.1} parent=0 // pred_check_branch
    %9 = sbr.rel (0) target = $region5
  $region4: #{gaussian_forward.1} parent=0 // pred_region
    _
  $region5: #{gaussian_forward.1} parent=0 // pred_fallthru
    _
  // Predicated region
  $region6: #{gaussian_forward.1} parent=0 // pred_check
    _
  $region7: #{gaussian_forward.1} parent=0 // pred_check_branch
    %11 = sbr.rel (0) target = $region9
  $region8: #{gaussian_forward.1} parent=0 // pred_region
    _
  $region9: #{gaussian_forward.1} parent=0 // pred_fallthru
    _
  // Predicated region
  $region10: #{gaussian_forward.1} parent=0 // pred_check
    _
  $region11: #{gaussian_forward.1} parent=0 // pred_check_branch
    %13 = sbr.rel (0) target = $region13
  $region12: #{gaussian_forward.1} parent=0 // pred_region
    _
  $region13: #{gaussian_forward.1} parent=0 // pred_fallthru
    _
  %v14 = vld [vmem:[%s0] sm:$0xff]
  %v15 = vld [vmem:[%s0 + $0x8] sm:$0xff]
  %v16 = vld [vmem:[%s0 + $0x10] sm:$0xff]
  %v17 = vld [vmem:[%s0 + $0x18] sm:$0xff]
  %v18 = vld [vmem:[%s0 + $0x20] sm:$0xff]
  %v19 = vld [vmem:[%s0 + $0x28] sm:$0xff]
  %v20 = vld [vmem:[%s0 + $0x30] sm:$0xff]
  %v21 = vld [vmem:[%s0 + $0x38] sm:$0xff]
  %v22 = vld [vmem:[%s0 + $0x40] sm:$0xff]
  %v23 = vld [vmem:[%s0 + $0x48] sm:$0xff]
  %v24 = vld [vmem:[%s0 + $0x50] sm:$0xff]
  %v25 = vld [vmem:[%s0 + $0x58] sm:$0xff]
  %v26 = vld [vmem:[%s0 + $0x60] sm:$0xff]
  %v27 = vld [vmem:[%s0 + $0x68] sm:$0xff]
  %v28 = vld [vmem:[%s0 + $0x70] sm:$0xff]
  %v29 = vld [vmem:[%s0 + $0x78] sm:$0xff]
  %v30 = vld [vmem:[%s1] sm:$0xff]
  %v31 = vld [vmem:[%s1 + $0x8] sm:$0xff]
  %v32 = vld [vmem:[%s1 + $0x10] sm:$0xff]
  %v33 = vld [vmem:[%s1 + $0x18] sm:$0xff]
  %v34 = vld [vmem:[%s1 + $0x20] sm:$0xff]
  %v35 = vld [vmem:[%s1 + $0x28] sm:$0xff]
  %v36 = vld [vmem:[%s1 + $0x30] sm:$0xff]
  %v37 = vld [vmem:[%s1 + $0x38] sm:$0xff]
  %v38 = vld [vmem:[%s1 + $0x40] sm:$0xff]
  %v39 = vld [vmem:[%s1 + $0x48] sm:$0xff]
  %v40 = vld [vmem:[%s1 + $0x50] sm:$0xff]
  %v41 = vld [vmem:[%s1 + $0x58] sm:$0xff]
  %v42 = vld [vmem:[%s1 + $0x60] sm:$0xff]
  %v43 = vld [vmem:[%s1 + $0x68] sm:$0xff]
  %v44 = vld [vmem:[%s1 + $0x70] sm:$0xff]
  %v45 = vld [vmem:[%s1 + $0x78] sm:$0xff]
  %47 = vset.pattern.permute.xlu0 0
  %48 = vperm.xlu0 %47, %v30
  %v49 = vpop.permute.xlu0 %48
  %52 = vset.pattern.permute.xlu0 0
  %53 = vperm.xlu0 %52, %v31
  %v54 = vpop.permute.xlu0 %53
  %57 = vset.pattern.permute.xlu0 0
  %58 = vperm.xlu0 %57, %v32
  %v59 = vpop.permute.xlu0 %58
  %62 = vset.pattern.permute.xlu0 0
  %63 = vperm.xlu0 %62, %v33
  %v64 = vpop.permute.xlu0 %63
  %67 = vset.pattern.permute.xlu0 0
  %68 = vperm.xlu0 %67, %v34
  %v69 = vpop.permute.xlu0 %68
  %72 = vset.pattern.permute.xlu0 0
  %73 = vperm.xlu0 %72, %v35
  %v74 = vpop.permute.xlu0 %73
  %77 = vset.pattern.permute.xlu0 0
  %78 = vperm.xlu0 %77, %v36
  %v79 = vpop.permute.xlu0 %78
  %82 = vset.pattern.permute.xlu0 0
  %83 = vperm.xlu0 %82, %v37
  %v84 = vpop.permute.xlu0 %83
  %87 = vset.pattern.permute.xlu0 0
  %88 = vperm.xlu0 %87, %v38
  %v89 = vpop.permute.xlu0 %88
  %92 = vset.pattern.permute.xlu0 0
  %93 = vperm.xlu0 %92, %v39
  %v94 = vpop.permute.xlu0 %93
  %97 = vset.pattern.permute.xlu0 0
  %98 = vperm.xlu0 %97, %v40
  %v99 = vpop.permute.xlu0 %98
  %102 = vset.pattern.permute.xlu0 0
  %103 = vperm.xlu0 %102, %v41
  %v104 = vpop.permute.xlu0 %103
  %107 = vset.pattern.permute.xlu0 0
  %108 = vperm.xlu0 %107, %v42
  %v109 = vpop.permute.xlu0 %108
  %112 = vset.pattern.permute.xlu0 0
  %113 = vperm.xlu0 %112, %v43
  %v114 = vpop.permute.xlu0 %113
  %117 = vset.pattern.permute.xlu0 0
  %118 = vperm.xlu0 %117, %v44
  %v119 = vpop.permute.xlu0 %118
  %122 = vset.pattern.permute.xlu0 0
  %123 = vperm.xlu0 %122, %v45
  %v124 = vpop.permute.xlu0 %123
  %v126 = vadd.f32 %v14, %v49
  %v127 = vadd.f32 %v15, %v54
  %v128 = vadd.f32 %v16, %v59
  %v129 = vadd.f32 %v17, %v64
  %v130 = vadd.f32 %v18, %v69
  %v131 = vadd.f32 %v19, %v74
  %v132 = vadd.f32 %v20, %v79
  %v133 = vadd.f32 %v21, %v84
  %v134 = vadd.f32 %v22, %v89
  %v135 = vadd.f32 %v23, %v94
  %v136 = vadd.f32 %v24, %v99
  %v137 = vadd.f32 %v25, %v104
  %v138 = vadd.f32 %v26, %v109
  %v139 = vadd.f32 %v27, %v114
  %v140 = vadd.f32 %v28, %v119
  %v141 = vadd.f32 %v29, %v124
  %v142 = vld [vmem:[%s2] sm:$0xff]
  %v143 = vld [vmem:[%s2 + $0x8] sm:$0xff]
  %v144 = vld [vmem:[%s2 + $0x10] sm:$0xff]
  %v145 = vld [vmem:[%s2 + $0x18] sm:$0xff]
  %v146 = vld [vmem:[%s2 + $0x20] sm:$0xff]
  %v147 = vld [vmem:[%s2 + $0x28] sm:$0xff]
  %v148 = vld [vmem:[%s2 + $0x30] sm:$0xff]
  %v149 = vld [vmem:[%s2 + $0x38] sm:$0xff]
  %v150 = vld [vmem:[%s2 + $0x40] sm:$0xff]
  %v151 = vld [vmem:[%s2 + $0x48] sm:$0xff]
  %v152 = vld [vmem:[%s2 + $0x50] sm:$0xff]
  %v153 = vld [vmem:[%s2 + $0x58] sm:$0xff]
  %v154 = vld [vmem:[%s2 + $0x60] sm:$0xff]
  %v155 = vld [vmem:[%s2 + $0x68] sm:$0xff]
  %v156 = vld [vmem:[%s2 + $0x70] sm:$0xff]
  %v157 = vld [vmem:[%s2 + $0x78] sm:$0xff]
  %158 = vmatprep.subr.mxu0 0.0
  %159 = vmatpush1.msra.mxu0 %v126
  %160 = vmatprep.subr.mxu0 0.0
  %161 = vmatpush1.msra.mxu0 %v127
  %162 = vmatprep.subr.mxu0 0.0
  %163 = vmatpush1.msra.mxu0 %v128
  %164 = vmatprep.subr.mxu0 0.0
  %165 = vmatpush1.msra.mxu0 %v129
  %166 = vmatprep.subr.mxu0 0.0
  %167 = vmatpush1.msra.mxu0 %v130
  %168 = vmatprep.subr.mxu0 0.0
  %169 = vmatpush1.msra.mxu0 %v131
  %170 = vmatprep.subr.mxu0 0.0
  %171 = vmatpush1.msra.mxu0 %v132
  %172 = vmatprep.subr.mxu0 0.0
  %173 = vmatpush1.msra.mxu0 %v133
  %174 = vmatprep.subr.mxu0 0.0
  %175 = vmatpush1.msra.mxu0 %v134
  %176 = vmatprep.subr.mxu0 0.0
  %177 = vmatpush1.msra.mxu0 %v135
  %178 = vmatprep.subr.mxu0 0.0
  %179 = vmatpush1.msra.mxu0 %v136
  %180 = vmatprep.subr.mxu0 0.0
  %181 = vmatpush1.msra.mxu0 %v137
  %182 = vmatprep.subr.mxu0 0.0
  %183 = vmatpush1.msra.mxu0 %v138
  %184 = vmatprep.subr.mxu0 0.0
  %185 = vmatpush1.msra.mxu0 %v139
  %186 = vmatprep.subr.mxu0 0.0
  %187 = vmatpush1.msra.mxu0 %v140
  %188 = vmatprep.subr.mxu0 0.0
  %189 = vmatpush1.msra.mxu0 %v141
  %190 = vmatprep.subr.mxu0 0.0
  %191 = vmatpush1.msra.mxu0 0.0
  %192 = vmatprep.subr.mxu0 0.0
  %193 = vmatpush1.msra.mxu0 0.0
  %194 = vmatprep.subr.mxu0 0.0
  %195 = vmatpush1.msra.mxu0 0.0
  %196 = vmatprep.subr.mxu0 0.0
  %197 = vmatpush1.msra.mxu0 0.0
  %198 = vmatprep.subr.mxu0 0.0
  %199 = vmatpush1.msra.mxu0 0.0
  %200 = vmatprep.subr.mxu0 0.0
  %201 = vmatpush1.msra.mxu0 0.0
  %202 = vmatprep.subr.mxu0 0.0
  %203 = vmatpush1.msra.mxu0 0.0
  %204 = vmatprep.subr.mxu0 0.0
  %205 = vmatpush1.msra.mxu0 0.0
  %206 = vmatprep.subr.mxu0 0.0
  %207 = vmatpush1.msra.mxu0 0.0
  %208 = vmatprep.subr.mxu0 0.0
  %209 = vmatpush1.msra.mxu0 0.0
  %210 = vmatprep.subr.mxu0 0.0
  %211 = vmatpush1.msra.mxu0 0.0
  %212 = vmatprep.subr.mxu0 0.0
  %213 = vmatpush1.msra.mxu0 0.0
  %214 = vmatprep.subr.mxu0 0.0
  %215 = vmatpush1.msra.mxu0 0.0
  %216 = vmatprep.subr.mxu0 0.0
  %217 = vmatpush1.msra.mxu0 0.0
  %218 = vmatprep.subr.mxu0 0.0
  %219 = vmatpush1.msra.mxu0 0.0
  %220 = vmatprep.subr.mxu0 0.0
  %221 = vmatpush1.msra.mxu0 0.0
  %222 = vmatprep.mubr.f32.mxu0 0.0
  %223 = vmatmul.mubr.f32.gmra.mrb[0].mxu0 %v142
  %v224 = vpop.f32.mrb[0].mxu0
  %v225 = vadd.f32 0.0, %v224
  %v226 = vpop.f32.mrb[0].mxu0
  %227 = vmatprep.mubr.f32.mxu0 0.0
  %228 = vmatmul.mubr.f32.gmra.mrb[0].mxu0 %v143
  %v229 = vpop.f32.mrb[0].mxu0
  %v230 = vadd.f32 0.0, %v229
  %v231 = vpop.f32.mrb[0].mxu0
  %232 = vmatprep.mubr.f32.mxu0 0.0
  %233 = vmatmul.mubr.f32.gmra.mrb[0].mxu0 %v144
  %v234 = vpop.f32.mrb[0].mxu0
  %v235 = vadd.f32 0.0, %v234
  %v236 = vpop.f32.mrb[0].mxu0
  %237 = vmatprep.mubr.f32.mxu0 0.0
  %238 = vmatmul.mubr.f32.gmra.mrb[0].mxu0 %v145
  %v239 = vpop.f32.mrb[0].mxu0
  %v240 = vadd.f32 0.0, %v239
  %v241 = vpop.f32.mrb[0].mxu0
  %242 = vmatprep.mubr.f32.mxu0 0.0
  %243 = vmatmul.mubr.f32.gmra.mrb[0].mxu0 %v146
  %v244 = vpop.f32.mrb[0].mxu0
  %v245 = vadd.f32 0.0, %v244
  %v246 = vpop.f32.mrb[0].mxu0
  %247 = vmatprep.mubr.f32.mxu0 0.0
  %248 = vmatmul.mubr.f32.gmra.mrb[0].mxu0 %v147
  %v249 = vpop.f32.mrb[0].mxu0
  %v250 = vadd.f32 0.0, %v249
  %v251 = vpop.f32.mrb[0].mxu0
  %252 = vmatprep.mubr.f32.mxu0 0.0
  %253 = vmatmul.mubr.f32.gmra.mrb[0].mxu0 %v148
  %v254 = vpop.f32.mrb[0].mxu0
  %v255 = vadd.f32 0.0, %v254
  %v256 = vpop.f32.mrb[0].mxu0
  %257 = vmatprep.mubr.f32.mxu0 0.0
  %258 = vmatmul.mubr.f32.gmra.mrb[0].mxu0 %v149
  %v259 = vpop.f32.mrb[0].mxu0
  %v260 = vadd.f32 0.0, %v259
  %v261 = vpop.f32.mrb[0].mxu0
  %262 = vmatprep.mubr.f32.mxu0 0.0
  %263 = vmatmul.mubr.f32.gmra.mrb[0].mxu0 %v150
  %v264 = vpop.f32.mrb[0].mxu0
  %v265 = vadd.f32 0.0, %v264
  %v266 = vpop.f32.mrb[0].mxu0
  %267 = vmatprep.mubr.f32.mxu0 0.0
  %268 = vmatmul.mubr.f32.gmra.mrb[0].mxu0 %v151
  %v269 = vpop.f32.mrb[0].mxu0
  %v270 = vadd.f32 0.0, %v269
  %v271 = vpop.f32.mrb[0].mxu0
  %272 = vmatprep.mubr.f32.mxu0 0.0
  %273 = vmatmul.mubr.f32.gmra.mrb[0].mxu0 %v152
  %v274 = vpop.f32.mrb[0].mxu0
  %v275 = vadd.f32 0.0, %v274
  %v276 = vpop.f32.mrb[0].mxu0
  %277 = vmatprep.mubr.f32.mxu0 0.0
  %278 = vmatmul.mubr.f32.gmra.mrb[0].mxu0 %v153
  %v279 = vpop.f32.mrb[0].mxu0
  %v280 = vadd.f32 0.0, %v279
  %v281 = vpop.f32.mrb[0].mxu0
  %282 = vmatprep.mubr.f32.mxu0 0.0
  %283 = vmatmul.mubr.f32.gmra.mrb[0].mxu0 %v154
  %v284 = vpop.f32.mrb[0].mxu0
  %v285 = vadd.f32 0.0, %v284
  %v286 = vpop.f32.mrb[0].mxu0
  %287 = vmatprep.mubr.f32.mxu0 0.0
  %288 = vmatmul.mubr.f32.gmra.mrb[0].mxu0 %v155
  %v289 = vpop.f32.mrb[0].mxu0
  %v290 = vadd.f32 0.0, %v289
  %v291 = vpop.f32.mrb[0].mxu0
  %292 = vmatprep.mubr.f32.mxu0 0.0
  %293 = vmatmul.mubr.f32.gmra.mrb[0].mxu0 %v156
  %v294 = vpop.f32.mrb[0].mxu0
  %v295 = vadd.f32 0.0, %v294
  %v296 = vpop.f32.mrb[0].mxu0
  %297 = vmatprep.mubr.f32.mxu0 0.0
  %298 = vmatmul.mubr.f32.gmra.mrb[0].mxu0 %v157
  %v299 = vpop.f32.mrb[0].mxu0
  %v300 = vadd.f32 0.0, %v299
  %v301 = vpop.f32.mrb[0].mxu0
  %302 = vdwg.mxu0
  %v303 = vmul.f32 %v225, %v126
  %v304 = vmul.f32 %v230, %v127
  %v305 = vmul.f32 %v235, %v128
  %v306 = vmul.f32 %v240, %v129
  %v307 = vmul.f32 %v245, %v130
  %v308 = vmul.f32 %v250, %v131
  %v309 = vmul.f32 %v255, %v132
  %v310 = vmul.f32 %v260, %v133
  %v311 = vmul.f32 %v265, %v134
  %v312 = vmul.f32 %v270, %v135
  %v313 = vmul.f32 %v275, %v136
  %v314 = vmul.f32 %v280, %v137
  %v315 = vmul.f32 %v285, %v138
  %v316 = vmul.f32 %v290, %v139
  %v317 = vmul.f32 %v295, %v140
  %v318 = vmul.f32 %v300, %v141
  %v319 = vadd.f32 %v303, %v304
  %v320 = vadd.f32 %v319, %v305
  %v321 = vadd.f32 %v320, %v306
  %v322 = vadd.f32 %v321, %v307
  %v323 = vadd.f32 %v322, %v308
  %v324 = vadd.f32 %v323, %v309
  %v325 = vadd.f32 %v324, %v310
  %v326 = vadd.f32 %v325, %v311
  %v327 = vadd.f32 %v326, %v312
  %v328 = vadd.f32 %v327, %v313
  %v329 = vadd.f32 %v328, %v314
  %v330 = vadd.f32 %v329, %v315
  %v331 = vadd.f32 %v330, %v316
  %v332 = vadd.f32 %v331, %v317
  %v333 = vadd.f32 %v332, %v318
  %v334 = vrot.slane %v333, 4
  %v335 = vadd.f32 %v333, %v334
  %v336 = vrot.slane %v335, 2
  %v337 = vadd.f32 %v335, %v336
  %v338 = vrot.slane %v337, 1
  %v339 = vadd.f32 %v337, %v338
  %p340 = scmp.eq.s32.totalorder 0, 0
  // Predicated region
  $region14: #{gaussian_forward.1} parent=0 // pred_check
    %p341 = pneg %p340
  $region15: #{gaussian_forward.1} parent=0 // pred_check_branch
    %343 = sbr.rel (%p341) target = $region17
  $region16: #{gaussian_forward.1} parent=0 // pred_region
    %344 = vst [vmem:[%s3] sm:$0x1] 0.0
  $region17: #{gaussian_forward.1} parent=0 // pred_fallthru
    _
  %v345 = vld [vmem:[%s3] sm:$0x1]
  %v346 = vadd.f32 %v345, %v339
  %347 = vst [vmem:[%s3] sm:$0x1] %v346
  // Predicated region
  $region18: #{gaussian_forward.1} parent=0 // pred_check
    _
  $region19: #{gaussian_forward.1} parent=0 // pred_check_branch
    %349 = sbr.rel (0) target = $region21
  $region20: #{gaussian_forward.1} parent=0 // pred_region
    _
  $region21: #{gaussian_forward.1} parent=0 // pred_fallthru
    _
  // Predicated region
  $region22: #{gaussian_forward.1} parent=0 // pred_check
    _
  $region23: #{gaussian_forward.1} parent=0 // pred_check_branch
    %351 = sbr.rel (0) target = $region25
  $region24: #{gaussian_forward.1} parent=0 // pred_region
    _
  $region25: #{gaussian_forward.1} parent=0 // pred_fallthru
    _

</llo_original>
